<compile_context>
chip_gen: v6e
topology: v6e:2x2x1
jax: 0.10.0
libtpu: 0.0.40
codegen_flags: <defaults>
</compile_context>

<pallas_src>
import functools

import jax
import jax.numpy as jnp
from jax.experimental import pallas as pl
from jax.experimental.pallas import tpu as pltpu


def _round_up(n, m):
    return (n + m - 1) // m * m


def _cdiv(a, b):
    return -(-a // b)


def _mlp_kernel(x_ref, w1_ref, b1_ref, w2_ref, b2_ref, o_ref, acc_ref):
    # x_ref:  (TM, D_in)     row tile (native dtype, fed straight to the MXU)
    # w1_ref: (D_in, TK)     chunk of W1^T (torch weight is (out, in))
    # b1_ref: (1, TK)
    # w2_ref: (TK, D_out)    chunk of W2^T
    # b2_ref: (1, D_out)
    # o_ref:  (TM, D_out)
    # acc_ref:(TM, D_out)    f32 accumulator across the hidden-chunk axis
    k = pl.program_id(1)

    @pl.when(k == 0)
    def _():
        acc_ref[...] = jnp.zeros_like(acc_ref)

    # First linear restricted to this hidden chunk (full K = D_in), then ReLU.
    h = jnp.dot(x_ref[...], w1_ref[...], preferred_element_type=jnp.float32)
    h = jnp.maximum(h + b1_ref[...].astype(jnp.float32), 0.0)
    # Second linear: accumulate this hidden chunk's contribution in f32.
    acc_ref[...] += jnp.dot(h.astype(w2_ref.dtype), w2_ref[...],
                            preferred_element_type=jnp.float32)

    @pl.when(k == pl.num_programs(1) - 1)
    def _():
        o_ref[...] = (acc_ref[...] + b2_ref[...].astype(jnp.float32)
                      ).astype(o_ref.dtype)


@functools.partial(
    jax.jit, static_argnames=("min_pallas_rows", "weight_vmem_budget_bytes"))
def mlp_forward(x, w1_t, b1, w2_t, b2, *, min_pallas_rows=64,
                weight_vmem_budget_bytes=24 << 20):
    """x: (..., hidden) -> (..., hidden); matches Linear -> ReLU -> Linear."""
    orig_shape = x.shape
    d_in = orig_shape[-1]
    d_h = w1_t.shape[1]
    d_out = w2_t.shape[1]

    x2d = x.reshape(-1, d_in)
    n_rows = x2d.shape[0]

    # Tiny inputs: pallas_call launch + padding overhead dominates; let XLA fuse.
    if n_rows < min_pallas_rows:
        h = jnp.maximum(
            jnp.dot(x2d, w1_t, preferred_element_type=jnp.float32)
            + b1.astype(jnp.float32), 0.0)
        y = (jnp.dot(h.astype(w2_t.dtype), w2_t,
                     preferred_element_type=jnp.float32)
             + b2.astype(jnp.float32))
        return y.astype(x.dtype).reshape(*orig_shape[:-1], d_out)

    # ---- static tiling decisions ---------------------------------------
    # Lane-dense feature padding (mathematically exact for Linear->ReLU->Linear).
    d_in_p = _round_up(d_in, 128)
    d_h_p = _round_up(d_h, 128)
    d_out_p = _round_up(d_out, 128)

    # Row granule: sub-32-bit dtypes pack 2/4 rows per sublane.
    g = max(8, 32 // jnp.dtype(x.dtype).itemsize)
    n_rows_g = _round_up(n_rows, g)
    if n_rows_g <= 256:
        nt, tm = 1, n_rows_g                     # single tile, minimal padding
    else:
        # >=2 equal g-aligned row tiles of <=~256 rows: bounded pad waste and
        # the "parallel" row axis can shard across both v7x TensorCores.
        nt = _cdiv(n_rows_g, 256)
        tm = _round_up(_cdiv(n_rows_g, nt), g)
    n_rows_p = nt * tm

    # Hidden-dim chunking so the (double-buffered) weight tiles fit a VMEM
    # budget even for large D (needed on v7x's 64 MiB VMEM per TensorCore).
    w_item = jnp.dtype(w1_t.dtype).itemsize
    per_tk_bytes = 2 * (d_in_p + d_out_p) * w_item
    tk_max = max(128, (weight_vmem_budget_bytes // per_tk_bytes) // 128 * 128)
    if tk_max >= d_h_p:
        nk, tk = 1, d_h_p
    else:
        nk = _cdiv(d_h_p, tk_max)
        tk = _round_up(_cdiv(d_h_p, nk), 128)
        d_h_p = nk * tk

    # ---- pad operands only when actually needed (no extra HBM passes) ---
    if n_rows_p != n_rows or d_in_p != d_in:
        x2d = jnp.pad(x2d, ((0, n_rows_p - n_rows), (0, d_in_p - d_in)))
    w1_p = w1_t if (d_in_p == d_in and d_h_p == d_h) else jnp.pad(
        w1_t, ((0, d_in_p - d_in), (0, d_h_p - d_h)))
    b1_p = b1.reshape(1, -1)
    if d_h_p != d_h:
        b1_p = jnp.pad(b1_p, ((0, 0), (0, d_h_p - d_h)))
    w2_p = w2_t if (d_h_p == d_h and d_out_p == d_out) else jnp.pad(
        w2_t, ((0, d_h_p - d_h), (0, d_out_p - d_out)))
    b2_p = b2.reshape(1, -1)
    if d_out_p != d_out:
        b2_p = jnp.pad(b2_p, ((0, 0), (0, d_out_p - d_out)))

    # ---- VMEM limit: actual footprint + headroom, capped for v7x --------
    x_item = jnp.dtype(x.dtype).itemsize
    vmem_bytes = (
        2 * tm * d_in_p * x_item                                   # x tiles
        + 2 * tm * d_out_p * x_item                                # out tiles
        + 2 * (d_in_p * tk + tk * d_out_p + tk + d_out_p) * w_item  # weights+biases
        + tm * d_out_p * 4                                         # f32 accumulator
    )
    vmem_limit = int(min(48 << 20, max(vmem_bytes + (2 << 20), 16 << 20)))

    grid = (nt, nk)
    out = pl.pallas_call(
        _mlp_kernel,
        out_shape=jax.ShapeDtypeStruct((n_rows_p, d_out_p), x.dtype),
        grid_spec=pltpu.PrefetchScalarGridSpec(
            num_scalar_prefetch=0,
            grid=grid,
            in_specs=[
                # Row tile; index constant along k, so each row tile is DMA'd once.
                pl.BlockSpec((tm, d_in_p), lambda i, k: (i, 0)),
                # Hidden-chunked weights/biases; constant along the row axis,
                # so with nk == 1 they are DMA'd once and stay VMEM-resident.
                pl.BlockSpec((d_in_p, tk), lambda i, k: (0, k)),   # W1^T chunk
                pl.BlockSpec((1, tk), lambda i, k: (0, k)),        # b1 chunk
                pl.BlockSpec((tk, d_out_p), lambda i, k: (k, 0)),  # W2^T chunk
                pl.BlockSpec((1, d_out_p), lambda i, k: (0, 0)),   # b2
            ],
            out_specs=pl.BlockSpec((tm, d_out_p), lambda i, k: (i, 0)),
            scratch_shapes=[pltpu.VMEM((tm, d_out_p), jnp.float32)],
        ),
        compiler_params=pltpu.CompilerParams(
            dimension_semantics=("parallel", "arbitrary"),
            vmem_limit_bytes=vmem_limit,
        ),
    )(x2d, w1_p, b1_p, w2_p, b2_p)

    if n_rows_p != n_rows or d_out_p != d_out:
        out = out[:n_rows, :d_out]
    return out.reshape(*orig_shape[:-1], d_out)


def init_params(key, hidden_channels, inner_hidden_channels=None,
                dtype=jnp.float32):
    """Mimics nn.Linear's uniform(-1/sqrt(fan_in), 1/sqrt(fan_in)) init."""
    inner = inner_hidden_channels or hidden_channels
    k1, k2, k3, k4 = jax.random.split(key, 4)
    bound1 = hidden_channels ** -0.5
    bound2 = inner ** -0.5
    # torch Linear weight is (out, in); we store the transpose (in, out).
    w1_t = jax.random.uniform(k1, (hidden_channels, inner), dtype, -bound1, bound1)
    b1 = jax.random.uniform(k2, (inner,), dtype, -bound1, bound1)
    w2_t = jax.random.uniform(k3, (inner, hidden_channels), dtype, -bound2, bound2)
    b2 = jax.random.uniform(k4, (hidden_channels,), dtype, -bound2, bound2)
    return w1_t, b1, w2_t, b2


def reference_forward(x, w1_t, b1, w2_t, b2):
    h = jnp.maximum(jnp.dot(x, w1_t, preferred_element_type=jnp.float32)
                    + b1.astype(jnp.float32), 0.0)
    y = (jnp.dot(h.astype(w2_t.dtype), w2_t, preferred_element_type=jnp.float32)
         + b2.astype(jnp.float32))
    return y.astype(x.dtype)


if __name__ == "__main__":
    key = jax.random.PRNGKey(0)
    kx1, kx2, kp1, kp2 = jax.random.split(key, 4)

    # Case 1: canonical slot-attention shape (batch, n_slots, hidden) = (2, 7, 64),
    # forced through the Pallas path: 14 rows -> one 16-row tile, lane pad to 128.
    hidden1, inner1 = 64, 128
    x1 = jax.random.normal(kx1, (2, 7, hidden1), jnp.float32)
    p1 = init_params(kp1, hidden1, inner1)
    out1 = jax.block_until_ready(mlp_forward(x1, *p1, min_pallas_rows=0))
    ref1 = reference_forward(x1, *p1)
    assert out1.shape == (2, 7, hidden1), out1.shape
    err1 = float(jnp.max(jnp.abs(out1 - ref1)))
    assert jnp.allclose(out1, ref1, atol=1e-4, rtol=1e-4), err1

    # Case 2: more rows + unaligned feature dims -> multi row-tile path with
    # row/lane padding; tiny weight budget forces nk > 1 to exercise the
    # hidden-dim (K) tiling + f32 accumulator path.
    hidden2, inner2 = 96, 160
    x2 = jax.random.normal(kx2, (3, 100, hidden2), jnp.float32)
    p2 = init_params(kp2, hidden2, inner2)
    out2 = jax.block_until_ready(
        mlp_forward(x2, *p2, min_pallas_rows=0,
                    weight_vmem_budget_bytes=256 * 1024))
    ref2 = reference_forward(x2, *p2)
    err2 = float(jnp.max(jnp.abs(out2 - ref2)))
    assert out2.shape == (3, 100, hidden2), out2.shape
    assert jnp.allclose(out2, ref2, atol=1e-4, rtol=1e-4), err2

    # Case 3: tiny input with the default threshold -> plain-XLA fast path.
    out3 = jax.block_until_ready(mlp_forward(x1, *p1, min_pallas_rows=64))
    assert jnp.allclose(out3, ref1, atol=1e-4, rtol=1e-4)

    print("KERNEL_OK")
</pallas_src>

<mosaic_0001>
module attributes {stable_mosaic.version = 11 : i64} {
  func.func @_mlp_kernel(%arg0: i32, %arg1: i32, %arg2: memref<16x128xf32, #tpu.memory_space<vmem>>, %arg3: memref<128x128xf32, #tpu.memory_space<vmem>>, %arg4: memref<1x128xf32, #tpu.memory_space<vmem>>, %arg5: memref<128x128xf32, #tpu.memory_space<vmem>>, %arg6: memref<1x128xf32, #tpu.memory_space<vmem>>, %arg7: memref<16x128xf32, #tpu.memory_space<vmem>>, %arg8: memref<16x128xf32, #tpu.memory_space<vmem>>) attributes {dimension_semantics = [#tpu.dimension_semantics<parallel>, #tpu.dimension_semantics<arbitrary>], iteration_bounds = array<i64: 1, 1>, scalar_prefetch = 0 : i64, scratch_operands = 1 : i64, tpu.core_type = #tpu.core_type<tc>, window_params = [{transform_indices = @transform_0, window_bounds = array<i64: 16, 128>}, {transform_indices = @transform_1, window_bounds = array<i64: 128, 128>}, {transform_indices = @transform_2, window_bounds = array<i64: 1, 128>}, {transform_indices = @transform_3, window_bounds = array<i64: 128, 128>}, {pipeline_mode = #tpu.pipeline_mode<synchronous>, transform_indices = @transform_4, window_bounds = array<i64: 1, 128>}, {transform_indices = @transform_5, window_bounds = array<i64: 16, 128>}]} {
    %c0_i32 = arith.constant 0 : i32
    %0 = arith.cmpi eq, %arg1, %c0_i32 : i32
    %1 = arith.extui %0 : i1 to i32
    %c0_i32_0 = arith.constant 0 : i32
    %2 = arith.cmpi ne, %1, %c0_i32_0 : i32
    scf.if %2 {
      %cst_16 = arith.constant 0.000000e+00 : f32
      %19 = vector.broadcast %cst_16 : f32 to vector<16x128xf32>
      %c0_17 = arith.constant 0 : index
      %c0_18 = arith.constant 0 : index
      %20 = vector.load %arg8[%c0_17, %c0_18] : memref<16x128xf32, #tpu.memory_space<vmem>>, vector<16x128xf32>
      tpu.vector_store %arg8[%c0_17, %c0_18], %19 {strides = array<i32>} : memref<16x128xf32, #tpu.memory_space<vmem>>, vector<16x128xf32>,
    } else {
    }
    %c0 = arith.constant 0 : index
    %c0_1 = arith.constant 0 : index
    %3 = vector.load %arg2[%c0, %c0_1] : memref<16x128xf32, #tpu.memory_space<vmem>>, vector<16x128xf32>
    %c0_2 = arith.constant 0 : index
    %c0_3 = arith.constant 0 : index
    %4 = vector.load %arg3[%c0_2, %c0_3] : memref<128x128xf32, #tpu.memory_space<vmem>>, vector<128x128xf32>
    %cst = arith.constant dense<0.000000e+00> : vector<16x128xf32>
    %5 = tpu.matmul %3, %4, %cst {dimension_numbers = #tpu.dot_dimension_numbers<[1], [0], [0], [1], [0, 0, 1, 1], [], []>} : vector<16x128xf32>, vector<128x128xf32>, vector<16x128xf32> -> vector<16x128xf32>
    %c0_4 = arith.constant 0 : index
    %c0_5 = arith.constant 0 : index
    %6 = vector.load %arg4[%c0_4, %c0_5] : memref<1x128xf32, #tpu.memory_space<vmem>>, vector<1x128xf32>
    %7 = vector.broadcast %6 : vector<1x128xf32> to vector<16x128xf32>
    %8 = arith.addf %5, %7 : vector<16x128xf32>
    %cst_6 = arith.constant 0.000000e+00 : f32
    %9 = vector.broadcast %cst_6 : f32 to vector<16x128xf32>
    %10 = arith.maximumf %8, %9 : vector<16x128xf32>
    %c0_7 = arith.constant 0 : index
    %c0_8 = arith.constant 0 : index
    %11 = vector.load %arg8[%c0_7, %c0_8] : memref<16x128xf32, #tpu.memory_space<vmem>>, vector<16x128xf32>
    %c0_9 = arith.constant 0 : index
    %c0_10 = arith.constant 0 : index
    %12 = vector.load %arg5[%c0_9, %c0_10] : memref<128x128xf32, #tpu.memory_space<vmem>>, vector<128x128xf32>
    %cst_11 = arith.constant dense<0.000000e+00> : vector<16x128xf32>
    %13 = tpu.matmul %10, %12, %cst_11 {dimension_numbers = #tpu.dot_dimension_numbers<[1], [0], [0], [1], [0, 0, 1, 1], [], []>} : vector<16x128xf32>, vector<128x128xf32>, vector<16x128xf32> -> vector<16x128xf32>
    %14 = arith.addf %11, %13 : vector<16x128xf32>
    %c0_12 = arith.constant 0 : index
    %c0_13 = arith.constant 0 : index
    %15 = vector.load %arg8[%c0_12, %c0_13] : memref<16x128xf32, #tpu.memory_space<vmem>>, vector<16x128xf32>
    tpu.vector_store %arg8[%c0_12, %c0_13], %14 {strides = array<i32>} : memref<16x128xf32, #tpu.memory_space<vmem>>, vector<16x128xf32>,
    %c0_i32_14 = arith.constant 0 : i32
    %16 = arith.cmpi eq, %arg1, %c0_i32_14 : i32
    %17 = arith.extui %16 : i1 to i32
    %c0_i32_15 = arith.constant 0 : i32
    %18 = arith.cmpi ne, %17, %c0_i32_15 : i32
    scf.if %18 {
      %c0_16 = arith.constant 0 : index
      %c0_17 = arith.constant 0 : index
      %19 = vector.load %arg8[%c0_16, %c0_17] : memref<16x128xf32, #tpu.memory_space<vmem>>, vector<16x128xf32>
      %c0_18 = arith.constant 0 : index
      %c0_19 = arith.constant 0 : index
      %20 = vector.load %arg6[%c0_18, %c0_19] : memref<1x128xf32, #tpu.memory_space<vmem>>, vector<1x128xf32>
      %21 = vector.broadcast %20 : vector<1x128xf32> to vector<16x128xf32>
      %22 = arith.addf %19, %21 : vector<16x128xf32>
      %c0_20 = arith.constant 0 : index
      %c0_21 = arith.constant 0 : index
      %23 = vector.load %arg7[%c0_20, %c0_21] : memref<16x128xf32, #tpu.memory_space<vmem>>, vector<16x128xf32>
      tpu.vector_store %arg7[%c0_20, %c0_21], %22 {strides = array<i32>} : memref<16x128xf32, #tpu.memory_space<vmem>>, vector<16x128xf32>,
    } else {
    }
    return
  }
  func.func @transform_0(%arg0: i32, %arg1: i32) -> (i32, i32) {
    %c0_i32 = arith.constant 0 : i32
    %c0_i32_0 = arith.constant 0 : i32
    return %arg0, %c0_i32 : i32, i32
  }
  func.func @transform_1(%arg0: i32, %arg1: i32) -> (i32, i32) {
    %c0_i32 = arith.constant 0 : i32
    %c0_i32_0 = arith.constant 0 : i32
    return %c0_i32, %arg1 : i32, i32
  }
  func.func @transform_2(%arg0: i32, %arg1: i32) -> (i32, i32) {
    %c0_i32 = arith.constant 0 : i32
    %c0_i32_0 = arith.constant 0 : i32
    return %c0_i32, %arg1 : i32, i32
  }
  func.func @transform_3(%arg0: i32, %arg1: i32) -> (i32, i32) {
    %c0_i32 = arith.constant 0 : i32
    %c0_i32_0 = arith.constant 0 : i32
    return %arg1, %c0_i32 : i32, i32
  }
  func.func @transform_4(%arg0: i32, %arg1: i32) -> (i32, i32) {
    %c0_i32 = arith.constant 0 : i32
    %c0_i32_0 = arith.constant 0 : i32
    %c0_i32_1 = arith.constant 0 : i32
    return %c0_i32, %c0_i32_0 : i32, i32
  }
  func.func @transform_5(%arg0: i32, %arg1: i32) -> (i32, i32) {
    %c0_i32 = arith.constant 0 : i32
    %c0_i32_0 = arith.constant 0 : i32
    return %arg0, %c0_i32 : i32, i32
  }
}

</mosaic_0001>

<llo_original>
// kernel: mlp_forward.1
$region0: #{mlp_forward.1}
  #allocation0 [shape = 'u32[]', space=smem, size = 0x4, offset = 0x4, fixed_abs, tag = 'smem constant byte address 0x4 - core index']
  #allocation1 [shape = 'u32[144,128]{1,0:T(1,128)}', space=vmem, size = 0x12000, scoped, tag = 'internal scratch']
  #allocation2 [shape = 'f32[16,128]{1,0:T(8,128)}', space=vmem, size = 0x2000, scoped, tag = 'scratch operand']
  %s0 = inlined_call_operand.vmem [shape: f32[16,128], index: 0, kind: input, shape index: {}]
  %s1 = inlined_call_operand.vmem [shape: f32[128,128], index: 1, kind: input, shape index: {}]
  %s2 = inlined_call_operand.vmem [shape: f32[1,128], index: 2, kind: input, shape index: {}]
  %s3 = inlined_call_operand.vmem [shape: f32[128,128], index: 3, kind: input, shape index: {}]
  %s4 = inlined_call_operand.vmem [shape: f32[1,128], index: 4, kind: input, shape index: {}]
  %s5 = inlined_call_operand.vmem [shape: f32[16,128], index: 5, kind: output, shape index: {}]
  %s6 = sld [smem:[#allocation0]]
  $region38: #{mlp_forward.1} parent=0
    _
  %s8 = ssub.s32 1, %s6
  %s9 = scalar_select 0, %s8, %s6
  // Predicated region
  $region2: #{mlp_forward.1} parent=0 // pred_check
    _
  $region3: #{mlp_forward.1} parent=0 // pred_check_branch
    %11 = sbr.rel (0) target = $region5
  $region4: #{mlp_forward.1} parent=0 // pred_region
    _
  $region5: #{mlp_forward.1} parent=0 // pred_fallthru
    _
  // Predicated region
  $region6: #{mlp_forward.1} parent=0 // pred_check
    _
  $region7: #{mlp_forward.1} parent=0 // pred_check_branch
    %13 = sbr.rel (0) target = $region9
  $region8: #{mlp_forward.1} parent=0 // pred_region
    _
  $region9: #{mlp_forward.1} parent=0 // pred_fallthru
    _
  // Predicated region
  $region10: #{mlp_forward.1} parent=0 // pred_check
    _
  $region11: #{mlp_forward.1} parent=0 // pred_check_branch
    %15 = sbr.rel (0) target = $region13
  $region12: #{mlp_forward.1} parent=0 // pred_region
    _
  $region13: #{mlp_forward.1} parent=0 // pred_fallthru
    _
  // Predicated region
  $region14: #{mlp_forward.1} parent=0 // pred_check
    _
  $region15: #{mlp_forward.1} parent=0 // pred_check_branch
    %17 = sbr.rel (0) target = $region17
  $region16: #{mlp_forward.1} parent=0 // pred_region
    _
  $region17: #{mlp_forward.1} parent=0 // pred_fallthru
    _
  // Predicated region
  $region18: #{mlp_forward.1} parent=0 // pred_check
    _
  $region19: #{mlp_forward.1} parent=0 // pred_check_branch
    %19 = sbr.rel (0) target = $region21
  $region20: #{mlp_forward.1} parent=0 // pred_region
    _
  $region21: #{mlp_forward.1} parent=0 // pred_fallthru
    _
  %p20 = scmp.eq.s32.totalorder 0, 0
  // Predicated region
  $region22: #{mlp_forward.1} parent=0 // pred_check
    %p21 = pneg %p20
  $region23: #{mlp_forward.1} parent=0 // pred_check_branch
    %23 = sbr.rel (%p21) target = $region25
  $region24: #{mlp_forward.1} parent=0 // pred_region
    %24 = vst [vmem:[#allocation2] sm:$0xff] 0.0
    %25 = vst [vmem:[#allocation2 + $0x8] sm:$0xff] 0.0
  $region25: #{mlp_forward.1} parent=0 // pred_fallthru
    _
  %v26 = vld [vmem:[%s0] sm:$0xff]
  %v27 = vld [vmem:[%s0 + $0x8] sm:$0xff]
  %v28 = vld [vmem:[%s1] sm:$0xff]
  %v29 = vld [vmem:[%s1 + $0x8] sm:$0xff]
  %v30 = vld [vmem:[%s1 + $0x10] sm:$0xff]
  %v31 = vld [vmem:[%s1 + $0x18] sm:$0xff]
  %v32 = vld [vmem:[%s1 + $0x20] sm:$0xff]
  %v33 = vld [vmem:[%s1 + $0x28] sm:$0xff]
  %v34 = vld [vmem:[%s1 + $0x30] sm:$0xff]
  %v35 = vld [vmem:[%s1 + $0x38] sm:$0xff]
  %v36 = vld [vmem:[%s1 + $0x40] sm:$0xff]
  %v37 = vld [vmem:[%s1 + $0x48] sm:$0xff]
  %v38 = vld [vmem:[%s1 + $0x50] sm:$0xff]
  %v39 = vld [vmem:[%s1 + $0x58] sm:$0xff]
  %v40 = vld [vmem:[%s1 + $0x60] sm:$0xff]
  %v41 = vld [vmem:[%s1 + $0x68] sm:$0xff]
  %v42 = vld [vmem:[%s1 + $0x70] sm:$0xff]
  %v43 = vld [vmem:[%s1 + $0x78] sm:$0xff]
  %v44 = vld [vmem:[%s2] sm:$0x1]
  %v46 = vlaneseq
  %v47 = vshrl.u32 %v46, 7
  %v48 = vsub.s32 0, %v47
  %v49 = vrot.slane %v44, %v48
  %51 = vmatprep.subr.mxu0 0.0
  %52 = vmatpush1.msra.mxu0 %v43
  %53 = vmatprep.subr.mxu0 0.0
  %54 = vmatpush1.msra.mxu0 %v42
  %55 = vmatprep.subr.mxu0 0.0
  %56 = vmatpush1.msra.mxu0 %v41
  %57 = vmatprep.subr.mxu0 0.0
  %58 = vmatpush1.msra.mxu0 %v40
  %59 = vmatprep.subr.mxu0 0.0
  %60 = vmatpush1.msra.mxu0 %v39
  %61 = vmatprep.subr.mxu0 0.0
  %62 = vmatpush1.msra.mxu0 %v38
  %63 = vmatprep.subr.mxu0 0.0
  %64 = vmatpush1.msra.mxu0 %v37
  %65 = vmatprep.subr.mxu0 0.0
  %66 = vmatpush1.msra.mxu0 %v36
  %67 = vmatprep.subr.mxu0 0.0
  %68 = vmatpush1.msra.mxu0 %v35
  %69 = vmatprep.subr.mxu0 0.0
  %70 = vmatpush1.msra.mxu0 %v34
  %71 = vmatprep.subr.mxu0 0.0
  %72 = vmatpush1.msra.mxu0 %v33
  %73 = vmatprep.subr.mxu0 0.0
  %74 = vmatpush1.msra.mxu0 %v32
  %75 = vmatprep.subr.mxu0 0.0
  %76 = vmatpush1.msra.mxu0 %v31
  %77 = vmatprep.subr.mxu0 0.0
  %78 = vmatpush1.msra.mxu0 %v30
  %79 = vmatprep.subr.mxu0 0.0
  %80 = vmatpush1.msra.mxu0 %v29
  %81 = vmatprep.subr.mxu0 0.0
  %82 = vmatpush1.msra.mxu0 %v28
  %83 = vmatprep.subr.mxu0 0.0
  %84 = vmatpush2.msra.mxu0 0.0
  %85 = vmatprep.subr.mxu0 0.0
  %86 = vmatpush2.msra.mxu0 0.0
  %87 = vmatprep.subr.mxu0 0.0
  %88 = vmatpush2.msra.mxu0 0.0
  %89 = vmatprep.subr.mxu0 0.0
  %90 = vmatpush2.msra.mxu0 0.0
  %91 = vmatprep.subr.mxu0 0.0
  %92 = vmatpush2.msra.mxu0 0.0
  %93 = vmatprep.subr.mxu0 0.0
  %94 = vmatpush2.msra.mxu0 0.0
  %95 = vmatprep.subr.mxu0 0.0
  %96 = vmatpush2.msra.mxu0 0.0
  %97 = vmatprep.subr.mxu0 0.0
  %98 = vmatpush2.msra.mxu0 0.0
  %99 = vmatprep.subr.mxu0 0.0
  %100 = vmatpush2.msra.mxu0 0.0
  %101 = vmatprep.subr.mxu0 0.0
  %102 = vmatpush2.msra.mxu0 0.0
  %103 = vmatprep.subr.mxu0 0.0
  %104 = vmatpush2.msra.mxu0 0.0
  %105 = vmatprep.subr.mxu0 0.0
  %106 = vmatpush2.msra.mxu0 0.0
  %107 = vmatprep.subr.mxu0 0.0
  %108 = vmatpush2.msra.mxu0 0.0
  %109 = vmatprep.subr.mxu0 0.0
  %110 = vmatpush2.msra.mxu0 0.0
  %111 = vmatprep.subr.mxu0 0.0
  %112 = vmatpush2.msra.mxu0 0.0
  %113 = vmatprep.subr.mxu0 0.0
  %114 = vmatpush2.msra.mxu0 0.0
  %115 = vmatprep.mubr.f32.mxu0 0.0
  %116 = vmatmul.mubr.f32.gmra.mxu0 %v26
  %v117 = vpop.f32.mrf.mxu0
  %v118 = vadd.f32 %v49, %v117
  %v119 = vpop.f32.mrf.mxu0
  %120 = vmatprep.mubr.f32.mxu0 0.0
  %121 = vmatmul.mubr.f32.gmra.mxu0 %v27
  %v122 = vpop.f32.mrf.mxu0
  %v123 = vadd.f32 %v49, %v122
  %v124 = vpop.f32.mrf.mxu0
  %125 = vdwg.mxu0
  %v126 = vmax.f32 %v118, 0.0
  %v127 = vmax.f32 %v123, 0.0
  %v128 = vld [vmem:[#allocation2] sm:$0xff]
  %v129 = vld [vmem:[#allocation2 + $0x8] sm:$0xff]
  %v130 = vld [vmem:[%s3] sm:$0xff]
  %v131 = vld [vmem:[%s3 + $0x8] sm:$0xff]
  %v132 = vld [vmem:[%s3 + $0x10] sm:$0xff]
  %v133 = vld [vmem:[%s3 + $0x18] sm:$0xff]
  %v134 = vld [vmem:[%s3 + $0x20] sm:$0xff]
  %v135 = vld [vmem:[%s3 + $0x28] sm:$0xff]
  %v136 = vld [vmem:[%s3 + $0x30] sm:$0xff]
  %v137 = vld [vmem:[%s3 + $0x38] sm:$0xff]
  %v138 = vld [vmem:[%s3 + $0x40] sm:$0xff]
  %v139 = vld [vmem:[%s3 + $0x48] sm:$0xff]
  %v140 = vld [vmem:[%s3 + $0x50] sm:$0xff]
  %v141 = vld [vmem:[%s3 + $0x58] sm:$0xff]
  %v142 = vld [vmem:[%s3 + $0x60] sm:$0xff]
  %v143 = vld [vmem:[%s3 + $0x68] sm:$0xff]
  %v144 = vld [vmem:[%s3 + $0x70] sm:$0xff]
  %v145 = vld [vmem:[%s3 + $0x78] sm:$0xff]
  %146 = vmatprep.subr.mxu0 0.0
  %147 = vmatpush1.msra.mxu0 %v145
  %148 = vmatprep.subr.mxu0 0.0
  %149 = vmatpush1.msra.mxu0 %v144
  %150 = vmatprep.subr.mxu0 0.0
  %151 = vmatpush1.msra.mxu0 %v143
  %152 = vmatprep.subr.mxu0 0.0
  %153 = vmatpush1.msra.mxu0 %v142
  %154 = vmatprep.subr.mxu0 0.0
  %155 = vmatpush1.msra.mxu0 %v141
  %156 = vmatprep.subr.mxu0 0.0
  %157 = vmatpush1.msra.mxu0 %v140
  %158 = vmatprep.subr.mxu0 0.0
  %159 = vmatpush1.msra.mxu0 %v139
  %160 = vmatprep.subr.mxu0 0.0
  %161 = vmatpush1.msra.mxu0 %v138
  %162 = vmatprep.subr.mxu0 0.0
  %163 = vmatpush1.msra.mxu0 %v137
  %164 = vmatprep.subr.mxu0 0.0
  %165 = vmatpush1.msra.mxu0 %v136
  %166 = vmatprep.subr.mxu0 0.0
  %167 = vmatpush1.msra.mxu0 %v135
  %168 = vmatprep.subr.mxu0 0.0
  %169 = vmatpush1.msra.mxu0 %v134
  %170 = vmatprep.subr.mxu0 0.0
  %171 = vmatpush1.msra.mxu0 %v133
  %172 = vmatprep.subr.mxu0 0.0
  %173 = vmatpush1.msra.mxu0 %v132
  %174 = vmatprep.subr.mxu0 0.0
  %175 = vmatpush1.msra.mxu0 %v131
  %176 = vmatprep.subr.mxu0 0.0
  %177 = vmatpush1.msra.mxu0 %v130
  %178 = vmatprep.subr.mxu0 0.0
  %179 = vmatpush2.msra.mxu0 0.0
  %180 = vmatprep.subr.mxu0 0.0
  %181 = vmatpush2.msra.mxu0 0.0
  %182 = vmatprep.subr.mxu0 0.0
  %183 = vmatpush2.msra.mxu0 0.0
  %184 = vmatprep.subr.mxu0 0.0
  %185 = vmatpush2.msra.mxu0 0.0
  %186 = vmatprep.subr.mxu0 0.0
  %187 = vmatpush2.msra.mxu0 0.0
  %188 = vmatprep.subr.mxu0 0.0
  %189 = vmatpush2.msra.mxu0 0.0
  %190 = vmatprep.subr.mxu0 0.0
  %191 = vmatpush2.msra.mxu0 0.0
  %192 = vmatprep.subr.mxu0 0.0
  %193 = vmatpush2.msra.mxu0 0.0
  %194 = vmatprep.subr.mxu0 0.0
  %195 = vmatpush2.msra.mxu0 0.0
  %196 = vmatprep.subr.mxu0 0.0
  %197 = vmatpush2.msra.mxu0 0.0
  %198 = vmatprep.subr.mxu0 0.0
  %199 = vmatpush2.msra.mxu0 0.0
  %200 = vmatprep.subr.mxu0 0.0
  %201 = vmatpush2.msra.mxu0 0.0
  %202 = vmatprep.subr.mxu0 0.0
  %203 = vmatpush2.msra.mxu0 0.0
  %204 = vmatprep.subr.mxu0 0.0
  %205 = vmatpush2.msra.mxu0 0.0
  %206 = vmatprep.subr.mxu0 0.0
  %207 = vmatpush2.msra.mxu0 0.0
  %208 = vmatprep.subr.mxu0 0.0
  %209 = vmatpush2.msra.mxu0 0.0
  %210 = vmatprep.mubr.f32.mxu0 0.0
  %211 = vmatmul.mubr.f32.gmra.mxu0 %v126
  %v212 = vpop.f32.mrf.mxu0
  %v213 = vadd.f32 0.0, %v212
  %v214 = vpop.f32.mrf.mxu0
  %215 = vmatprep.mubr.f32.mxu0 0.0
  %216 = vmatmul.mubr.f32.gmra.mxu0 %v127
  %v217 = vpop.f32.mrf.mxu0
  %v218 = vadd.f32 0.0, %v217
  %v219 = vpop.f32.mrf.mxu0
  %220 = vdwg.mxu0
  %v221 = vadd.f32 %v128, %v213
  %v222 = vadd.f32 %v129, %v218
  %223 = vst [vmem:[#allocation2] sm:$0xff] %v221
  %224 = vst [vmem:[#allocation2 + $0x8] sm:$0xff] %v222
  // Predicated region
  $region26: #{mlp_forward.1} parent=0 // pred_check
    %p225 = pneg %p20
  $region27: #{mlp_forward.1} parent=0 // pred_check_branch
    %227 = sbr.rel (%p225) target = $region29
  $region28: #{mlp_forward.1} parent=0 // pred_region
    %v228 = vld [vmem:[#allocation2] sm:$0xff]
    %v229 = vld [vmem:[#allocation2 + $0x8] sm:$0xff]
    %v230 = vld [vmem:[%s4] sm:$0x1]
    %v232 = vlaneseq
    %v233 = vshrl.u32 %v232, 7
    %v234 = vsub.s32 0, %v233
    %v235 = vrot.slane %v230, %v234
    %v237 = vadd.f32 %v228, %v235
    %v238 = vadd.f32 %v229, %v235
    %239 = vst [vmem:[%s5] sm:$0xff] %v237
    %240 = vst [vmem:[%s5 + $0x8] sm:$0xff] %v238
  $region29: #{mlp_forward.1} parent=0 // pred_fallthru
    _
  // Predicated region
  $region30: #{mlp_forward.1} parent=0 // pred_check
    _
  $region31: #{mlp_forward.1} parent=0 // pred_check_branch
    %242 = sbr.rel (0) target = $region33
  $region32: #{mlp_forward.1} parent=0 // pred_region
    _
  $region33: #{mlp_forward.1} parent=0 // pred_fallthru
    _
  // Predicated region
  $region34: #{mlp_forward.1} parent=0 // pred_check
    _
  $region35: #{mlp_forward.1} parent=0 // pred_check_branch
    %244 = sbr.rel (0) target = $region37
  $region36: #{mlp_forward.1} parent=0 // pred_region
    _
  $region37: #{mlp_forward.1} parent=0 // pred_fallthru
    _

</llo_original>
